<compile_context>
chip_gen: v7x
topology: tpu7x:2x2x1
jax: 0.10.0
libtpu: 0.0.40
codegen_flags: <defaults>
</compile_context>

<pallas_src>
import math
from functools import partial

import jax
import jax.numpy as jnp
from jax.experimental import pallas as pl
from jax.experimental.pallas import tpu as pltpu

MASK_VALUE = -1e30  # finite stand-in for -finfo(f32).max
VMEM_LIMIT = 48 * 1024 * 1024


def _round_up(x, m):
    return -(-x // m) * m


# ----------------------------------------------------------------------------
# Tiled linear (y = x @ W.T), bf16 MXU inputs, f32 accumulation.
# Weight is pre-transposed once in the wrapper -> plain (tm,tk)@(tk,tn) dots.
# ----------------------------------------------------------------------------

def _linear_kernel(x_ref, w_ref, o_ref, acc_ref):
    @pl.when(pl.program_id(2) == 0)
    def _():
        acc_ref[...] = jnp.zeros_like(acc_ref)

    acc_ref[...] += jnp.dot(x_ref[...], w_ref[...],
                            preferred_element_type=jnp.float32)

    @pl.when(pl.program_id(2) == pl.num_programs(2) - 1)
    def _():
        o_ref[...] = acc_ref[...].astype(o_ref.dtype)


def linear(x, w, out_dtype=jnp.float32):
    """x: (..., K), w: (O, K) -> x @ w.T (PyTorch nn.Linear, bias=False)."""
    lead, K = x.shape[:-1], x.shape[-1]
    O = w.shape[0]
    M = int(math.prod(lead)) if lead else 1
    x2 = x.reshape(M, K).astype(jnp.bfloat16)
    wt = jnp.transpose(w).astype(jnp.bfloat16)          # (K, O), one-time transpose

    tm = min(_round_up(M, 8), 512)
    Mp = _round_up(M, tm)
    tk = min(_round_up(K, 128), 2048)
    Kp = _round_up(K, tk)
    tn = min(_round_up(O, 128), 512)
    Op = _round_up(O, tn)

    if (Mp, Kp) != (M, K):
        x2 = jnp.pad(x2, ((0, Mp - M), (0, Kp - K)))
    if (Kp, Op) != (K, O):
        wt = jnp.pad(wt, ((0, Kp - K), (0, Op - O)))

    out = pl.pallas_call(
        _linear_kernel,
        grid=(Mp // tm, Op // tn, Kp // tk),
        in_specs=[pl.BlockSpec((tm, tk), lambda i, j, kk: (i, kk)),
                  pl.BlockSpec((tk, tn), lambda i, j, kk: (kk, j))],
        out_specs=pl.BlockSpec((tm, tn), lambda i, j, kk: (i, j)),
        out_shape=jax.ShapeDtypeStruct((Mp, Op), out_dtype),
        scratch_shapes=[pltpu.VMEM((tm, tn), jnp.float32)],
        compiler_params=pltpu.CompilerParams(
            dimension_semantics=("parallel", "parallel", "arbitrary"),
            vmem_limit_bytes=VMEM_LIMIT),
    )(x2, wt)
    return out[:M, :O].reshape(*lead, O)


def layer_norm(x, weight, bias, eps=1e-5):
    mu = jnp.mean(x, axis=-1, keepdims=True)
    var = jnp.mean((x - mu) ** 2, axis=-1, keepdims=True)
    return (x - mu) / jnp.sqrt(var + eps) * weight + bias


# ----------------------------------------------------------------------------
# Light local (windowed causal) attention — previous-window K/V carried in
# VMEM scratch, masks built in-kernel, per-head output (no in-kernel concat).
# ----------------------------------------------------------------------------

def _local_attn_kernel(q_ref, k_ref, v_ref, o_ref, kprev_ref, vprev_ref, *, scale):
    j = pl.program_id(1)

    @pl.when(j == 0)
    def _():
        kprev_ref[...] = jnp.zeros_like(kprev_ref)
        vprev_ref[...] = jnp.zeros_like(vprev_ref)

    q = q_ref[0, 0]          # (H, W, Dh) bf16
    k = k_ref[0, 0]          # (H, W, Dh) bf16 — current window
    v = v_ref[0, 0]
    kp = kprev_ref[...]      # previous window (zeros / masked at j == 0)
    vp = vprev_ref[...]
    H, W, _ = q.shape

    s_cur = jnp.einsum('hqd,hkd->hqk', q, k,
                       preferred_element_type=jnp.float32) * scale
    s_prev = jnp.einsum('hqd,hkd->hqk', q, kp,
                        preferred_element_type=jnp.float32) * scale

    qq = jax.lax.broadcasted_iota(jnp.int32, (W, W), 0)
    kk = jax.lax.broadcasted_iota(jnp.int32, (W, W), 1)
    s_cur = jnp.where((kk <= qq)[None], s_cur, MASK_VALUE)
    s_prev = jnp.where(j > 0, s_prev, MASK_VALUE)

    mx = jnp.maximum(jnp.max(s_cur, axis=-1, keepdims=True),
                     jnp.max(s_prev, axis=-1, keepdims=True))
    p_cur = jnp.exp(s_cur - mx)
    p_prev = jnp.exp(s_prev - mx)
    denom = (jnp.sum(p_cur, axis=-1, keepdims=True)
             + jnp.sum(p_prev, axis=-1, keepdims=True))

    o = jnp.einsum('hqk,hkd->hqd', p_cur.astype(v.dtype), v,
                   preferred_element_type=jnp.float32)
    o = o + jnp.einsum('hqk,hkd->hqd', p_prev.astype(vp.dtype), vp,
                       preferred_element_type=jnp.float32)
    o = o * pl.reciprocal(denom, approx=True)
    o_ref[0, 0] = o.astype(o_ref.dtype)                 # per-head (H, W, Dh)

    # carry this window's K/V for the next window of the same batch element
    kprev_ref[...] = k
    vprev_ref[...] = v


def light_local_attention(x, p, *, heads, dim_head, window_size):
    # LocalMHA(prenorm=True, causal=True, look_backward=1, exact_windowsize=False)
    b, n, _ = x.shape
    # TODO(synk): LocalAttention autopad path not implemented; require seq % window == 0.
    assert n % window_size == 0
    nw = n // window_size

    xn = layer_norm(x, p['ln_w'], p['ln_b'])
    qkv = linear(xn, p['to_qkv'], out_dtype=jnp.bfloat16)
    q, k, v = jnp.split(qkv, 3, axis=-1)

    def to_blocks(t):  # (b, n, H*Dh) -> (b, nw, H, W, Dh)
        t = t.reshape(b, nw, window_size, heads, dim_head)
        return t.transpose(0, 1, 3, 2, 4)

    q, k, v = map(to_blocks, (q, k, v))
    blk = (1, 1, heads, window_size, dim_head)
    idx = lambda i, j: (i, j, 0, 0, 0)

    out = pl.pallas_call(
        partial(_local_attn_kernel, scale=dim_head ** -0.5),
        grid=(b, nw),
        in_specs=[pl.BlockSpec(blk, idx),
                  pl.BlockSpec(blk, idx),
                  pl.BlockSpec(blk, idx)],
        out_specs=pl.BlockSpec(blk, idx),
        out_shape=jax.ShapeDtypeStruct((b, nw, heads, window_size, dim_head),
                                       jnp.bfloat16),
        scratch_shapes=[pltpu.VMEM((heads, window_size, dim_head), jnp.bfloat16),
                        pltpu.VMEM((heads, window_size, dim_head), jnp.bfloat16)],
        compiler_params=pltpu.CompilerParams(
            dimension_semantics=("parallel", "arbitrary")),
    )(q, k, v)

    out = out.transpose(0, 1, 3, 2, 4).reshape(b, n, heads * dim_head)
    return linear(out, p['to_out'])


# ----------------------------------------------------------------------------
# Coordinate-descent router scores (coor_descent) with structural prefix masks
# ----------------------------------------------------------------------------

def _coor_descent_kernel(s_ref, lim_ref, eps_ref, inv_eps_ref, o_ref, *, logk, n_iters):
    s = s_ref[...]                                       # (tb, N) f32
    lim = lim_ref[...]                                   # (tb, 1) int32
    col = jax.lax.broadcasted_iota(jnp.int32, s.shape, 1)
    valid = col < lim                                    # contiguous valid prefix
    s = jnp.where(valid, s, MASK_VALUE)
    a0 = jnp.zeros_like(s[:, :1])
    b0 = -s

    def body(i, carry):
        a, b = carry
        eps_i = eps_ref[i]
        inv_eps_i = inv_eps_ref[i]
        sb = (s + b) * inv_eps_i
        sb = jnp.where(valid, sb, MASK_VALUE)
        mx = jnp.max(sb, axis=-1, keepdims=True)
        lse = mx + jnp.log(jnp.sum(jnp.exp(sb - mx), axis=-1, keepdims=True))
        a = eps_i * (logk - lse)
        b = -jnp.maximum(s + a, 0.0)
        return a, b

    a, b = jax.lax.fori_loop(0, n_iters, body, (a0, b0), unroll=4)
    scores = jnp.exp((s + a + b) * inv_eps_ref[n_iters])
    o_ref[...] = jnp.where(valid, scores, 0.0)


def coor_descent(s, limits, *, k, n_iters=20, eps=0.03, eps_init=4.0, eps_decay=0.7):
    """s: (R, N) scores; limits: (R,) number of valid (prefix) columns per row."""
    R, N = s.shape
    tb = min(_round_up(R, 8), 128)
    Rp = _round_up(R, tb)
    sp = s.astype(jnp.float32)
    lim = limits.astype(jnp.int32).reshape(R, 1)
    if Rp != R:
        sp = jnp.pad(sp, ((0, Rp - R), (0, 0)))
        lim = jnp.pad(lim, ((0, Rp - R), (0, 0)))        # padded rows fully masked

    # static epsilon schedule: iteration i uses eps_sched[i]; final exp uses eps_sched[n_iters]
    eps_sched = []
    cur = max(eps_init if eps_init is not None else eps, eps)
    for _ in range(n_iters + 1):
        eps_sched.append(cur)
        cur = max(cur * eps_decay, eps)
    eps_arr = jnp.asarray(eps_sched, jnp.float32)
    inv_eps_arr = jnp.asarray([1.0 / e for e in eps_sched], jnp.float32)

    out = pl.pallas_call(
        partial(_coor_descent_kernel, logk=math.log(max(float(k), 1e-20)),
                n_iters=n_iters),
        grid=(Rp // tb,),
        in_specs=[pl.BlockSpec((tb, N), lambda i: (i, 0)),
                  pl.BlockSpec((tb, 1), lambda i: (i, 0)),
                  pl.BlockSpec(memory_space=pltpu.MemorySpace.SMEM),
                  pl.BlockSpec(memory_space=pltpu.MemorySpace.SMEM)],
        out_specs=pl.BlockSpec((tb, N), lambda i: (i, 0)),
        out_shape=jax.ShapeDtypeStruct((Rp, N), jnp.float32),
        compiler_params=pltpu.CompilerParams(
            dimension_semantics=("parallel",),
            vmem_limit_bytes=VMEM_LIMIT),
    )(sp, lim, eps_arr, inv_eps_arr)
    return out[:R]


def _route(raw_scores, limits, *, num_tokens, fetch_k_ratio=9.0 / 8.0,
           n_iters=20, eps=0.03, eps_decay=0.7, eps_init=4.0):
    """CoordinateDescentRouter core (straight_through=True, 1 routing token)."""
    R, N = raw_scores.shape
    effective_k = min(num_tokens * fetch_k_ratio, N)
    scores = coor_descent(raw_scores, limits, k=effective_k, n_iters=n_iters,
                          eps=eps, eps_init=eps_init, eps_decay=eps_decay)
    sel_scores, sel_idx = jax.lax.top_k(scores, num_tokens)
    # straight-through: forward value is 1.0 for valid selected tokens
    # TODO(synk): backward pass of the straight-through estimator not implemented (forward-only).
    sel_scores = sel_scores + jax.lax.stop_gradient(1.0 - sel_scores)
    sel_mask = sel_idx < limits[:, None]
    sel_scores = jnp.where(sel_mask, sel_scores, 0.0)
    return sel_idx, sel_scores, sel_mask


# ----------------------------------------------------------------------------
# Heavy (routed) attention — score scalings folded in-kernel, padded key axis,
# query-tiled grid, deduped (B,1,Nk) key mask, bf16 output.
# ----------------------------------------------------------------------------

def _routed_attn_kernel(q_ref, k_ref, v_ref, m_ref, skv_ref, sq_ref, o_ref, *,
                        scale, mul_q, mul_k):
    q = q_ref[0]                  # (H, tq, Dh) bf16
    k = k_ref[0]                  # (H, Nk, Dh) bf16
    v = v_ref[0]
    valid = m_ref[0] != 0         # (1, Nk)
    skv = skv_ref[0]              # (1, Nk) f32 key scores (1.0 at null / pad)

    s = jnp.einsum('hqd,hkd->hqk', q, k,
                   preferred_element_type=jnp.float32) * scale
    if mul_q:
        s = s * sq_ref[0][None]                      # (1, tq, 1) query scores
    if mul_k:
        s = s * skv[None]                            # fold k * score
    s = jnp.where(valid[None], s, MASK_VALUE)
    mx = jnp.max(s, axis=-1, keepdims=True)
    p = jnp.exp(s - mx)
    denom = jnp.sum(p, axis=-1, keepdims=True)
    p = p * skv[None]                                # fold v * score
    o = jnp.einsum('hqk,hkd->hqd', p.astype(v.dtype), v,
                   preferred_element_type=jnp.float32)
    o = o * pl.reciprocal(denom, approx=True)
    o_ref[0] = o.astype(o_ref.dtype)                 # per-head (H, tq, Dh)


def heavy_attention(x, context, context_mask, scores_kv, scores_q, p, *, heads,
                    dim_head, multiply_keys_by_score=False,
                    multiply_queries_by_score=False):
    # colt5 Attention (non-flash path, num_kv_routes = 1, no rotary).
    B, nq, _ = x.shape
    nk = context.shape[1]
    # Reference Attention applies the same prenorm to x and context.
    xn = layer_norm(x, p['ln_w'], p['ln_b'])
    cn = layer_norm(context, p['ln_w'], p['ln_b'])

    q = linear(xn, p['to_q'], out_dtype=jnp.bfloat16)
    q = q.reshape(B, nq, heads, dim_head).transpose(0, 2, 1, 3)         # (B,H,nq,Dh)

    kv = linear(cn, p['to_kv'], out_dtype=jnp.bfloat16)
    k_flat, v_flat = jnp.split(kv, 2, axis=-1)                          # chunk like PyTorch
    k = k_flat.reshape(B, nk, heads, dim_head).transpose(0, 2, 1, 3)
    v = v_flat.reshape(B, nk, heads, dim_head).transpose(0, 2, 1, 3)

    # null K/V prepended; pad key axis for lane-friendly shapes.
    nk1 = nk + 1
    pad_mult = 128 if nk1 > 128 else 8
    nk1p = _round_up(nk1, pad_mult)
    null_k = jnp.broadcast_to(p['null_kv'][0].astype(jnp.bfloat16)[None, :, None, :],
                              (B, heads, 1, dim_head))
    null_v = jnp.broadcast_to(p['null_kv'][1].astype(jnp.bfloat16)[None, :, None, :],
                              (B, heads, 1, dim_head))
    kpad = jnp.zeros((B, heads, nk1p - nk1, dim_head), jnp.bfloat16)
    k = jnp.concatenate([null_k, k, kpad], axis=2)
    v = jnp.concatenate([null_v, v, kpad], axis=2)

    # key mask deduped across heads & queries: (B, 1, nk1p); null key always valid.
    attn_mask = jnp.concatenate(
        [jnp.ones((B, 1), jnp.int32),
         context_mask.astype(jnp.int32),
         jnp.zeros((B, nk1p - nk1), jnp.int32)], axis=1)[:, None, :]
    # key score vector (B, 1, nk1p): 1.0 for null & padded keys.
    skv = jnp.concatenate(
        [jnp.ones((B, 1), jnp.float32),
         scores_kv.astype(jnp.float32),
         jnp.ones((B, nk1p - nk1), jnp.float32)], axis=1)[:, None, :]

    # query-tile grid axis bounds the per-step VMEM working set
    tq = nq if nq <= 256 else 256
    nqp = _round_up(nq, tq)
    sq = scores_q.astype(jnp.float32)[..., None]                        # (B, nq, 1)
    if nqp != nq:
        q = jnp.pad(q, ((0, 0), (0, 0), (0, nqp - nq), (0, 0)))
        sq = jnp.pad(sq, ((0, 0), (0, nqp - nq), (0, 0)))

    out = pl.pallas_call(
        partial(_routed_attn_kernel, scale=dim_head ** -0.5,
                mul_q=multiply_queries_by_score, mul_k=multiply_keys_by_score),
        grid=(B, nqp // tq),
        in_specs=[
            pl.BlockSpec((1, heads, tq, dim_head), lambda i, t: (i, 0, t, 0)),
            pl.BlockSpec((1, heads, nk1p, dim_head), lambda i, t: (i, 0, 0, 0)),
            pl.BlockSpec((1, heads, nk1p, dim_head), lambda i, t: (i, 0, 0, 0)),
            pl.BlockSpec((1, 1, nk1p), lambda i, t: (i, 0, 0)),
            pl.BlockSpec((1, 1, nk1p), lambda i, t: (i, 0, 0)),
            pl.BlockSpec((1, tq, 1), lambda i, t: (i, t, 0)),
        ],
        out_specs=pl.BlockSpec((1, heads, tq, dim_head), lambda i, t: (i, 0, t, 0)),
        out_shape=jax.ShapeDtypeStruct((B, heads, nqp, dim_head), jnp.bfloat16),
        compiler_params=pltpu.CompilerParams(
            dimension_semantics=("parallel", "parallel"),
            vmem_limit_bytes=VMEM_LIMIT),
    )(q, k, v, attn_mask, skv, sq)

    out = out.transpose(0, 2, 1, 3).reshape(B, nqp, heads * dim_head)[:, :nq]
    return linear(out, p['to_out'])


# ----------------------------------------------------------------------------
# Full module forward
# ----------------------------------------------------------------------------

def conditional_routed_autoregressive_attention(x, params, cfg):
    batch, seq, dim = x.shape
    w = cfg['heavy_window_size']
    # TODO(synk): seq <= heavy_window_size edge case (degenerate heavy path) not handled.
    assert seq > w

    light_out = light_local_attention(
        x, params['light'], heads=cfg['light_heads'],
        dim_head=cfg['light_dim_head'], window_size=cfg['light_window_size'])

    # pad sequence to a multiple of the heavy window
    padded_seq = _round_up(seq, w)
    x_p = jnp.pad(x, ((0, 0), (0, padded_seq - seq), (0, 0))) if padded_seq != seq else x
    windows = padded_seq // w
    nwin = windows - 1
    rows = batch * nwin
    num_q = cfg['num_heavy_tokens_q']
    num_kv = cfg['num_heavy_tokens_kv']

    # ---- Q routing (structural valid-prefix lengths; no mask tensors) ----
    q_tok = x_p[:, w:].reshape(rows, w, dim)
    q_limits = jnp.clip(seq - (jnp.arange(nwin, dtype=jnp.int32) + 1) * w, 0, w)
    q_limits = jnp.broadcast_to(q_limits[None, :], (batch, nwin)).reshape(rows)

    if w > num_q:
        s_q = jnp.einsum('rnd,d->rn', q_tok, params['q_routing_token'][0])
        idx_q, scores_q, _ = _route(s_q, q_limits, num_tokens=num_q)
        routed_q = jnp.take_along_axis(q_tok, idx_q[..., None], axis=1)
    else:
        idx_q = None
        scores_q = jnp.ones((rows, w), jnp.float32)
        routed_q = q_tok

    # ---- KV routing: scores computed ONCE per (batch, padded_seq) token; ----
    # ---- routed kv gathered directly from x_p (no windows x seq blow-up). ----
    kv_limits = (jnp.arange(nwin, dtype=jnp.int32) + 1) * w
    kv_limits = jnp.broadcast_to(kv_limits[None, :], (batch, nwin)).reshape(rows)

    if padded_seq > num_kv:
        s_kv_b = jnp.einsum('bnd,d->bn', x_p, params['kv_routing_token'][0])
        s_kv = jnp.broadcast_to(s_kv_b[:, None, :],
                                (batch, nwin, padded_seq)).reshape(rows, padded_seq)
        idx_kv, scores_kv, routed_kv_mask = _route(s_kv, kv_limits, num_tokens=num_kv)
        idx_kv_b = idx_kv.reshape(batch, nwin, num_kv)
        routed_kv = x_p[jnp.arange(batch)[:, None, None], idx_kv_b]
        routed_kv = routed_kv.reshape(rows, num_kv, dim)
    else:
        idx_kv = None
        scores_kv = jnp.ones((rows, padded_seq), jnp.float32)
        routed_kv = jnp.broadcast_to(
            x_p[:, None], (batch, nwin, padded_seq, dim)).reshape(rows, padded_seq, dim)
        routed_kv_mask = (jax.lax.broadcasted_iota(jnp.int32, (rows, padded_seq), 1)
                          < kv_limits[:, None])

    # TODO(synk): random_route path and rotary_emb=True path not implemented.
    routed_out = heavy_attention(
        routed_q, routed_kv, routed_kv_mask, scores_kv, scores_q, params['heavy'],
        heads=cfg['heavy_heads'], dim_head=cfg['heavy_dim_head'],
        multiply_keys_by_score=cfg['multiply_keys_by_score'],
        multiply_queries_by_score=cfg['multiply_queries_by_score'])

    if idx_q is not None:
        routed_out = routed_out * scores_q[..., None]
        heavy_out = jnp.broadcast_to(params['null_q_token'][None, None, :],
                                     (rows, w, dim))
        bi = jnp.arange(rows)[:, None]
        heavy_out = heavy_out.at[bi, idx_q].set(routed_out)      # route_back scatter
    else:
        heavy_out = routed_out

    heavy_out = heavy_out.reshape(batch, nwin * w, dim)
    heavy_out = heavy_out[:, :seq - w]
    heavy_out = jnp.pad(heavy_out, ((0, 0), (w, 0), (0, 0)))
    return light_out + heavy_out


# ----------------------------------------------------------------------------
# Deterministic parameter initialization (shapes follow the PyTorch __init__)
# ----------------------------------------------------------------------------

def init_params(key, *, dim, light_heads, light_dim_head, heavy_heads, heavy_dim_head):
    ks = jax.random.split(key, 9)

    def lin(k, out_f, in_f):
        return jax.random.normal(k, (out_f, in_f), jnp.float32) / jnp.sqrt(in_f)

    return {
        'light': {
            'ln_w': jnp.ones((dim,), jnp.float32),
            'ln_b': jnp.zeros((dim,), jnp.float32),
            'to_qkv': lin(ks[0], 3 * light_heads * light_dim_head, dim),
            'to_out': lin(ks[1], dim, light_heads * light_dim_head),
        },
        'null_q_token': jax.random.normal(ks[2], (dim,), jnp.float32),
        'q_routing_token': jax.random.normal(ks[3], (1, dim), jnp.float32),
        'kv_routing_token': jax.random.normal(ks[4], (1, dim), jnp.float32),
        'heavy': {
            'ln_w': jnp.ones((dim,), jnp.float32),
            'ln_b': jnp.zeros((dim,), jnp.float32),
            'null_kv': jax.random.normal(ks[5], (2, heavy_heads, heavy_dim_head), jnp.float32),
            'to_q': lin(ks[6], heavy_heads * heavy_dim_head, dim),
            'to_kv': lin(ks[7], 2 * heavy_heads * heavy_dim_head, dim),
            'to_out': lin(ks[8], dim, heavy_heads * heavy_dim_head),
        },
    }


if __name__ == "__main__":
    cfg = dict(
        dim=32,
        num_heavy_tokens_q=2,
        num_heavy_tokens_kv=2,
        light_heads=2, light_dim_head=8, light_window_size=4,
        heavy_heads=2, heavy_dim_head=8, heavy_window_size=4,
        multiply_keys_by_score=False,
        multiply_queries_by_score=False,
    )
    batch, seq = 2, 16

    key = jax.random.PRNGKey(0)
    kx, kp = jax.random.split(key)
    x = jax.random.normal(kx, (batch, seq, cfg['dim']), jnp.float32)
    params = init_params(
        kp, dim=cfg['dim'],
        light_heads=cfg['light_heads'], light_dim_head=cfg['light_dim_head'],
        heavy_heads=cfg['heavy_heads'], heavy_dim_head=cfg['heavy_dim_head'])

    out = conditional_routed_autoregressive_attention(x, params, cfg)
    out = jax.block_until_ready(out)
    assert out.shape == (batch, seq, cfg['dim'])
    assert bool(jnp.all(jnp.isfinite(out)))
    print("KERNEL_OK")
</pallas_src>

<mosaic_0001>
module attributes {stable_mosaic.version = 11 : i64} {
  func.func @_linear_kernel(%arg0: i32, %arg1: i32, %arg2: i32, %arg3: memref<32x128xbf16, #tpu.memory_space<vmem>>, %arg4: memref<128x128xbf16, #tpu.memory_space<vmem>>, %arg5: memref<32x128xbf16, #tpu.memory_space<vmem>>, %arg6: memref<32x128xf32, #tpu.memory_space<vmem>>) attributes {dimension_semantics = [#tpu.dimension_semantics<parallel>, #tpu.dimension_semantics<parallel>, #tpu.dimension_semantics<arbitrary>], iteration_bounds = array<i64: 1, 1, 1>, scalar_prefetch = 0 : i64, scratch_operands = 1 : i64, tpu.core_type = #tpu.core_type<tc>, window_params = [{transform_indices = @transform_0, window_bounds = array<i64: 32, 128>}, {transform_indices = @transform_1, window_bounds = array<i64: 128, 128>}, {transform_indices = @transform_2, window_bounds = array<i64: 32, 128>}]} {
    %c0_i32 = arith.constant 0 : i32
    %0 = arith.cmpi eq, %arg2, %c0_i32 : i32
    %1 = arith.extui %0 : i1 to i32
    %c0_i32_0 = arith.constant 0 : i32
    %2 = arith.cmpi ne, %1, %c0_i32_0 : i32
    scf.if %2 {
      %cst_10 = arith.constant 0.000000e+00 : f32
      %12 = vector.broadcast %cst_10 : f32 to vector<32x128xf32>
      %c0_11 = arith.constant 0 : index
      %c0_12 = arith.constant 0 : index
      %13 = vector.load %arg6[%c0_11, %c0_12] : memref<32x128xf32, #tpu.memory_space<vmem>>, vector<32x128xf32>
      tpu.vector_store %arg6[%c0_11, %c0_12], %12 {strides = array<i32>} : memref<32x128xf32, #tpu.memory_space<vmem>>, vector<32x128xf32>,
    } else {
    }
    %c0 = arith.constant 0 : index
    %c0_1 = arith.constant 0 : index
    %3 = vector.load %arg6[%c0, %c0_1] : memref<32x128xf32, #tpu.memory_space<vmem>>, vector<32x128xf32>
    %c0_2 = arith.constant 0 : index
    %c0_3 = arith.constant 0 : index
    %4 = vector.load %arg3[%c0_2, %c0_3] : memref<32x128xbf16, #tpu.memory_space<vmem>>, vector<32x128xbf16>
    %c0_4 = arith.constant 0 : index
    %c0_5 = arith.constant 0 : index
    %5 = vector.load %arg4[%c0_4, %c0_5] : memref<128x128xbf16, #tpu.memory_space<vmem>>, vector<128x128xbf16>
    %cst = arith.constant dense<0.000000e+00> : vector<32x128xf32>
    %6 = tpu.matmul %4, %5, %cst {dimension_numbers = #tpu.dot_dimension_numbers<[1], [0], [0], [1], [0, 0, 1, 1], [], []>} : vector<32x128xbf16>, vector<128x128xbf16>, vector<32x128xf32> -> vector<32x128xf32>
    %7 = arith.addf %3, %6 : vector<32x128xf32>
    %c0_6 = arith.constant 0 : index
    %c0_7 = arith.constant 0 : index
    %8 = vector.load %arg6[%c0_6, %c0_7] : memref<32x128xf32, #tpu.memory_space<vmem>>, vector<32x128xf32>
    tpu.vector_store %arg6[%c0_6, %c0_7], %7 {strides = array<i32>} : memref<32x128xf32, #tpu.memory_space<vmem>>, vector<32x128xf32>,
    %c0_i32_8 = arith.constant 0 : i32
    %9 = arith.cmpi eq, %arg2, %c0_i32_8 : i32
    %10 = arith.extui %9 : i1 to i32
    %c0_i32_9 = arith.constant 0 : i32
    %11 = arith.cmpi ne, %10, %c0_i32_9 : i32
    scf.if %11 {
      %c0_10 = arith.constant 0 : index
      %c0_11 = arith.constant 0 : index
      %12 = vector.load %arg6[%c0_10, %c0_11] : memref<32x128xf32, #tpu.memory_space<vmem>>, vector<32x128xf32>
      %13 = arith.truncf %12 : vector<32x128xf32> to vector<32x128xbf16>
      %c0_12 = arith.constant 0 : index
      %c0_13 = arith.constant 0 : index
      %14 = vector.load %arg5[%c0_12, %c0_13] : memref<32x128xbf16, #tpu.memory_space<vmem>>, vector<32x128xbf16>
      tpu.vector_store %arg5[%c0_12, %c0_13], %13 {strides = array<i32>} : memref<32x128xbf16, #tpu.memory_space<vmem>>, vector<32x128xbf16>,
    } else {
    }
    return
  }
  func.func @transform_0(%arg0: i32, %arg1: i32, %arg2: i32) -> (i32, i32) {
    %c0_i32 = arith.constant 0 : i32
    return %arg0, %arg2 : i32, i32
  }
  func.func @transform_1(%arg0: i32, %arg1: i32, %arg2: i32) -> (i32, i32) {
    %c0_i32 = arith.constant 0 : i32
    return %arg2, %arg1 : i32, i32
  }
  func.func @transform_2(%arg0: i32, %arg1: i32, %arg2: i32) -> (i32, i32) {
    %c0_i32 = arith.constant 0 : i32
    return %arg0, %arg1 : i32, i32
  }
}

</mosaic_0001>

<llo_original>
// kernel: tpu_custom_call.1
$region0: #{tpu_custom_call.1}
  #allocation0 [shape = 'u32[]', space=smem, size = 0x4, offset = 0x4, fixed_abs, tag = 'smem constant byte address 0x4 - core index']
  #allocation1 [shape = 'u32[144,128]{1,0:T(1,128)}', space=vmem, size = 0x12000, scoped, tag = 'internal scratch']
  #allocation2 [shape = 'f32[32,128]{1,0:T(8,128)}', space=vmem, size = 0x4000, scoped, tag = 'scratch operand']
  %s0 = inlined_call_operand.hbm [shape: bf16[32,128], index: 0, kind: input, shape index: {}]
  %s1 = inlined_call_operand.hbm [shape: bf16[128,128], index: 1, kind: input, shape index: {}]
  %s2 = inlined_call_operand.hbm [shape: bf16[32,128], index: 2, kind: output, shape index: {}]
  %s3 = sld [smem:[#allocation0]]
  $region34: #{tpu_custom_call.1} parent=0
    _
  %s5 = ssub.s32 1, %s3
  %s6 = scalar_select 0, %s5, %s3
  $region1: #{tpu_custom_call.1} parent=0
    #allocation3 [shape = 'u8[8192]{0}', space=vmem, size = 0x2000, scoped, tag = 'input window, operand 0, single buffered']
    #allocation4 [shape = 's32[1]{0}', space=sflag, size = 0x4, scoped, tag = 'scoped memory for tpu_custom_call.1']
    #allocation5 [shape = 's32[1]{0}', space=sflag, size = 0x4, scoped, tag = 'scoped memory for tpu_custom_call.1']
    #allocation6 [shape = 'u8[32768]{0}', space=vmem, size = 0x8000, scoped, tag = 'input window, operand 1, single buffered']
    #allocation7 [shape = 's32[1]{0}', space=sflag, size = 0x4, scoped, tag = 'scoped memory for tpu_custom_call.1']
    #allocation8 [shape = 'u8[8192]{0}', space=vmem, size = 0x2000, scoped, tag = 'output window, operand 0, single buffered']
    %7 = vsyncpa [#allocation4], 0
    %8 = vsyncpa [#allocation7], 0
    %9 = vsyncpa [#allocation5], 0
    // Predicated region
    $region2: #{tpu_custom_call.1} parent=1 // pred_check
      _
    $region3: #{tpu_custom_call.1} parent=1 // pred_check_branch
      %11 = sbr.rel (0) target = $region5
    $region4: #{tpu_custom_call.1} parent=1 // pred_region
      %s13 = ssub.s32 256, 256
      %14 = vsyncadd [#allocation4], %s13
      %s15 = sshll.u32 [#allocation3], 4
      %s16 = int_to_ptr.vmem [resolvable:$true] %s15
      %21 = dma.hbm_to_vmem [thread:$0]  %s0, 256, %s16, [#allocation4], 64, 64, 4
    $region5: #{tpu_custom_call.1} parent=1 // pred_fallthru
      _
    // Predicated region
    $region6: #{tpu_custom_call.1} parent=1 // pred_check
      _
    $region7: #{tpu_custom_call.1} parent=1 // pred_check_branch
      %23 = sbr.rel (0) target = $region9
    $region8: #{tpu_custom_call.1} parent=1 // pred_region
      %s25 = ssub.s32 1024, 1024
      %26 = vsyncadd [#allocation7], %s25
      %s27 = sshll.u32 [#allocation6], 4
      %s28 = int_to_ptr.vmem [resolvable:$true] %s27
      %33 = dma.hbm_to_vmem [thread:$0]  %s1, 1024, %s28, [#allocation7], 64, 64, 4
    $region9: #{tpu_custom_call.1} parent=1 // pred_fallthru
      _
    // Predicated region
    $region10: #{tpu_custom_call.1} parent=1 // pred_check
      _
    $region11: #{tpu_custom_call.1} parent=1 // pred_check_branch
      %35 = sbr.rel (0) target = $region13
    $region12: #{tpu_custom_call.1} parent=1 // pred_region
      %36 = dma.done [#allocation4], 256
    $region13: #{tpu_custom_call.1} parent=1 // pred_fallthru
      _
    // Predicated region
    $region14: #{tpu_custom_call.1} parent=1 // pred_check
      _
    $region15: #{tpu_custom_call.1} parent=1 // pred_check_branch
      %38 = sbr.rel (0) target = $region17
    $region16: #{tpu_custom_call.1} parent=1 // pred_region
      %39 = dma.done [#allocation7], 1024
    $region17: #{tpu_custom_call.1} parent=1 // pred_fallthru
      _
    %p41 = scmp.eq.s32.totalorder 0, 0
    // Predicated region
    $region18: #{tpu_custom_call.1} parent=1 // pred_check
      %p42 = pneg %p41
    $region19: #{tpu_custom_call.1} parent=1 // pred_check_branch
      %44 = sbr.rel (%p42) target = $region21
    $region20: #{tpu_custom_call.1} parent=1 // pred_region
      %45 = vst [vmem:[#allocation2] sm:$0xff] 0.0
      %46 = vst [vmem:[#allocation2 + $0x8] sm:$0xff] 0.0
      %47 = vst [vmem:[#allocation2 + $0x10] sm:$0xff] 0.0
      %48 = vst [vmem:[#allocation2 + $0x18] sm:$0xff] 0.0
    $region21: #{tpu_custom_call.1} parent=1 // pred_fallthru
      _
    %v49 = vld [vmem:[#allocation2] sm:$0xff]
    %v50 = vld [vmem:[#allocation2 + $0x8] sm:$0xff]
    %v51 = vld [vmem:[#allocation2 + $0x10] sm:$0xff]
    %v52 = vld [vmem:[#allocation2 + $0x18] sm:$0xff]
    %v53 = vld [vmem:[#allocation3] sm:$0xf]
    %v54 = vld [vmem:[#allocation3 + $0x4] sm:$0xf]
    %v55 = vld [vmem:[#allocation3 + $0x8] sm:$0xf]
    %v56 = vld [vmem:[#allocation3 + $0xc] sm:$0xf]
    %v57 = vld [vmem:[#allocation6] sm:$0xf]
    %v58 = vld [vmem:[#allocation6 + $0x4] sm:$0xf]
    %v59 = vld [vmem:[#allocation6 + $0x8] sm:$0xf]
    %v60 = vld [vmem:[#allocation6 + $0xc] sm:$0xf]
    %v61 = vld [vmem:[#allocation6 + $0x10] sm:$0xf]
    %v62 = vld [vmem:[#allocation6 + $0x14] sm:$0xf]
    %v63 = vld [vmem:[#allocation6 + $0x18] sm:$0xf]
    %v64 = vld [vmem:[#allocation6 + $0x1c] sm:$0xf]
    %v65 = vld [vmem:[#allocation6 + $0x20] sm:$0xf]
    %v66 = vld [vmem:[#allocation6 + $0x24] sm:$0xf]
    %v67 = vld [vmem:[#allocation6 + $0x28] sm:$0xf]
    %v68 = vld [vmem:[#allocation6 + $0x2c] sm:$0xf]
    %v69 = vld [vmem:[#allocation6 + $0x30] sm:$0xf]
    %v70 = vld [vmem:[#allocation6 + $0x34] sm:$0xf]
    %v71 = vld [vmem:[#allocation6 + $0x38] sm:$0xf]
    %v72 = vld [vmem:[#allocation6 + $0x3c] sm:$0xf]
    %v77 = vunpack.c.l.b16 %v53
    %v78 = vunpack.c.l.b16 %v54
    %v79 = vunpack.c.l.b16 %v55
    %v80 = vunpack.c.l.b16 %v56
    %v81 = vpack.c.b16 %v78, %v77
    %v82 = vpack.c.b16 %v80, %v79
    %v101 = vunpack.c.l.b16 %v57
    %v102 = vunpack.c.l.b16 %v58
    %v103 = vunpack.c.l.b16 %v59
    %v104 = vunpack.c.l.b16 %v60
    %v105 = vunpack.c.l.b16 %v61
    %v106 = vunpack.c.l.b16 %v62
    %v107 = vunpack.c.l.b16 %v63
    %v108 = vunpack.c.l.b16 %v64
    %v109 = vunpack.c.l.b16 %v65
    %v110 = vunpack.c.l.b16 %v66
    %v111 = vunpack.c.l.b16 %v67
    %v112 = vunpack.c.l.b16 %v68
    %v113 = vunpack.c.l.b16 %v69
    %v114 = vunpack.c.l.b16 %v70
    %v115 = vunpack.c.l.b16 %v71
    %v116 = vunpack.c.l.b16 %v72
    %v117 = vpack.c.b16 %v102, %v101
    %v118 = vpack.c.b16 %v104, %v103
    %v119 = vpack.c.b16 %v106, %v105
    %v120 = vpack.c.b16 %v108, %v107
    %v121 = vpack.c.b16 %v110, %v109
    %v122 = vpack.c.b16 %v112, %v111
    %v123 = vpack.c.b16 %v114, %v113
    %v124 = vpack.c.b16 %v116, %v115
    %133 = vmatprep.subr.bf16.mxu0 0
    %134 = vmatpush1.bf16.msra.mxu0 %v117
    %135 = vmatprep.subr.bf16.mxu0 0
    %136 = vmatpush1.bf16.msra.mxu0 %v118
    %137 = vmatprep.subr.bf16.mxu0 0
    %138 = vmatpush1.bf16.msra.mxu0 %v119
    %139 = vmatprep.subr.bf16.mxu0 0
    %140 = vmatpush1.bf16.msra.mxu0 %v120
    %141 = vmatprep.subr.bf16.mxu0 0
    %142 = vmatpush1.bf16.msra.mxu0 %v121
    %143 = vmatprep.subr.bf16.mxu0 0
    %144 = vmatpush1.bf16.msra.mxu0 %v122
    %145 = vmatprep.subr.bf16.mxu0 0
    %146 = vmatpush1.bf16.msra.mxu0 %v123
    %147 = vmatprep.subr.bf16.mxu0 0
    %148 = vmatpush1.bf16.msra.mxu0 %v124
    %149 = vmatprep.subr.bf16.mxu0 0
    %150 = vmatpush1.bf16.msra.mxu0 0
    %151 = vmatprep.subr.bf16.mxu0 0
    %152 = vmatpush1.bf16.msra.mxu0 0
    %153 = vmatprep.subr.bf16.mxu0 0
    %154 = vmatpush1.bf16.msra.mxu0 0
    %155 = vmatprep.subr.bf16.mxu0 0
    %156 = vmatpush1.bf16.msra.mxu0 0
    %157 = vmatprep.subr.bf16.mxu0 0
    %158 = vmatpush1.bf16.msra.mxu0 0
    %159 = vmatprep.subr.bf16.mxu0 0
    %160 = vmatpush1.bf16.msra.mxu0 0
    %161 = vmatprep.subr.bf16.mxu0 0
    %162 = vmatpush1.bf16.msra.mxu0 0
    %163 = vmatprep.subr.bf16.mxu0 0
    %164 = vmatpush1.bf16.msra.mxu0 0
    %165 = vmatprep.mubr.bf16.mxu0 0
    %166 = vmatmul.mubr.bf16.gmra.mrb[0].mxu0 %v81
    %v167 = vpop.f32.mrb[0].mxu0
    %v168 = vadd.f32 0.0, %v167
    %v169 = vpop.f32.mrb[0].mxu0
    %v170 = vpop.f32.mrb[0].mxu0
    %v171 = vadd.f32 0.0, %v170
    %v172 = vpop.f32.mrb[0].mxu0
    %173 = vmatprep.mubr.bf16.mxu0 0
    %174 = vmatmul.mubr.bf16.gmra.mrb[0].mxu0 %v82
    %v175 = vpop.f32.mrb[0].mxu0
    %v176 = vadd.f32 0.0, %v175
    %v177 = vpop.f32.mrb[0].mxu0
    %v178 = vpop.f32.mrb[0].mxu0
    %v179 = vadd.f32 0.0, %v178
    %v180 = vpop.f32.mrb[0].mxu0
    %181 = vdwg.mxu0
    %v182 = vadd.f32 %v49, %v168
    %v183 = vadd.f32 %v50, %v171
    %v184 = vadd.f32 %v51, %v176
    %v185 = vadd.f32 %v52, %v179
    %186 = vst [vmem:[#allocation2] sm:$0xff] %v182
    %187 = vst [vmem:[#allocation2 + $0x8] sm:$0xff] %v183
    %188 = vst [vmem:[#allocation2 + $0x10] sm:$0xff] %v184
    %189 = vst [vmem:[#allocation2 + $0x18] sm:$0xff] %v185
    // Predicated region
    $region22: #{tpu_custom_call.1} parent=1 // pred_check
      %p190 = pneg %p41
    $region23: #{tpu_custom_call.1} parent=1 // pred_check_branch
      %192 = sbr.rel (%p190) target = $region25
    $region24: #{tpu_custom_call.1} parent=1 // pred_region
      %v193 = vld [vmem:[#allocation2] sm:$0xff]
      %v194 = vld [vmem:[#allocation2 + $0x8] sm:$0xff]
      %v195 = vld [vmem:[#allocation2 + $0x10] sm:$0xff]
      %v196 = vld [vmem:[#allocation2 + $0x18] sm:$0xff]
      %v197 = vpack.c.bf16 %v194, %v193
      %v198 = vpack.c.bf16 %v196, %v195
      %v201 = vunpack.c.l.b16 %v197
      %v202 = vunpack.c.h.b16 %v197
      %v203 = vunpack.c.l.b16 %v198
      %v204 = vunpack.c.h.b16 %v198
      %v205 = vpack.c.b16 %v201, %v201
      %v206 = vpack.c.b16 %v202, %v202
      %v207 = vpack.c.b16 %v203, %v203
      %v208 = vpack.c.b16 %v204, %v204
      %213 = vst [vmem:[#allocation8] sm:$0xf] %v205
      %214 = vst [vmem:[#allocation8 + $0x4] sm:$0xf] %v206
      %215 = vst [vmem:[#allocation8 + $0x8] sm:$0xf] %v207
      %216 = vst [vmem:[#allocation8 + $0xc] sm:$0xf] %v208
    $region25: #{tpu_custom_call.1} parent=1 // pred_fallthru
      _
    // Predicated region
    $region26: #{tpu_custom_call.1} parent=1 // pred_check
      _
    $region27: #{tpu_custom_call.1} parent=1 // pred_check_branch
      %218 = sbr.rel (0) target = $region29
    $region28: #{tpu_custom_call.1} parent=1 // pred_region
      %s220 = ssub.s32 256, 256
      %221 = vsyncadd [#allocation5], %s220
      %s222 = sshll.u32 [#allocation8], 4
      %s223 = int_to_ptr.vmem [resolvable:$true] %s222
      %228 = dma.vmem_to_hbm [thread:$0]  %s223, 256, %s2, [#allocation5], 64, 64, 4
    $region29: #{tpu_custom_call.1} parent=1 // pred_fallthru
      _
    // Predicated region
    $region30: #{tpu_custom_call.1} parent=1 // pred_check
      _
    $region31: #{tpu_custom_call.1} parent=1 // pred_check_branch
      %230 = sbr.rel (0) target = $region33
    $region32: #{tpu_custom_call.1} parent=1 // pred_region
      %231 = dma.done [#allocation5], 256
    $region33: #{tpu_custom_call.1} parent=1 // pred_fallthru
      _
    %232 = vsyncpa [#allocation4], 1
    %233 = vsyncpa [#allocation7], 1
    %234 = vsyncpa [#allocation5], 1

</llo_original>
